<compile_context>
chip_gen: v6e
topology: v6e:2x2x1
jax: 0.10.0
libtpu: 0.0.40
codegen_flags: <defaults>
</compile_context>

<pallas_src>
import functools

import jax
import jax.numpy as jnp
from jax.experimental import pallas as pl
from jax.experimental.pallas import tpu as pltpu


# ----------------------------- fused Pallas kernel ---------------------------
def _mlp_fused_kernel(x_ref, w_ref, b_ref, o_ref, *, activation, num_layers):
    """All layers fused in one grid step; layer loop is statically unrolled.

    x_ref: (B, D)       input
    w_ref: (L, D, D)    all layer weights, already (in, out)
    b_ref: (L, 1, D)    all layer biases
    o_ref: (L, B, D)    per-layer output slabs (last slab = final output)
    """
    h = x_ref[...]
    for l in range(num_layers):  # static unroll -> 5 back-to-back MXU matmuls
        pre = jnp.dot(h, w_ref[l], preferred_element_type=jnp.float32) + b_ref[l]
        if l < num_layers - 1:
            if activation == "relu":
                h = jnp.maximum(pre, 0.0)
            else:  # "step"
                h = jnp.where(pre > 0.0, 1.0, 0.0).astype(jnp.float32)
            o_ref[l] = h.astype(o_ref.dtype)
        else:
            # output layer: no activation
            o_ref[l] = pre.astype(o_ref.dtype)


def mlp_forward_pallas(x_flat, w_stack, b_stack, *, activation="relu"):
    """Runs all L layers in one fused pallas_call (single grid step).

    x_flat:  (B, D)       float32
    w_stack: (L, D, D)    float32, weights pre-transposed to (in, out)
    b_stack: (L, 1, D)    float32
    returns: (L, B, D)    stacked per-layer outputs (last slab = final output)
    """
    L, K, N = w_stack.shape
    B, D = x_flat.shape
    assert D == K and K == N, "fused kernel assumes uniform layer width"

    kernel = functools.partial(
        _mlp_fused_kernel, activation=activation, num_layers=L
    )

    return pl.pallas_call(
        kernel,
        out_shape=jax.ShapeDtypeStruct((L, B, N), jnp.float32),
        grid=(1,),
        in_specs=[
            pl.BlockSpec((B, D), lambda i: (0, 0)),        # input
            pl.BlockSpec((L, K, N), lambda i: (0, 0, 0)),  # all weights (~1.25 MiB)
            pl.BlockSpec((L, 1, N), lambda i: (0, 0, 0)),  # all biases
        ],
        out_specs=pl.BlockSpec((L, B, N), lambda i: (0, 0, 0)),
        compiler_params=pltpu.CompilerParams(
            dimension_semantics=("arbitrary",),
        ),
    )(x_flat, w_stack, b_stack)


# ------------------------- parameter initialization --------------------------
def _kaiming_uniform(key, out_f, in_f):
    # torch.nn.init.kaiming_uniform_(w, nonlinearity='relu'):
    # bound = sqrt(2) * sqrt(3 / fan_in) = sqrt(6 / fan_in)
    bound = jnp.sqrt(6.0 / in_f)
    return jax.random.uniform(
        key, (out_f, in_f), jnp.float32, minval=-bound, maxval=bound
    )


def _linear_bias(key, in_f, out_f):
    # default torch Linear bias init: U(-1/sqrt(fan_in), 1/sqrt(fan_in))
    bound = 1.0 / jnp.sqrt(jnp.float32(in_f))
    return jax.random.uniform(
        key, (out_f,), jnp.float32, minval=-bound, maxval=bound
    )


def init_flexible_network(key, input_size, hidden_size, output_size,
                          num_hidden_layers):
    """PyTorch-layout params: weight (out, in), bias (out,)."""
    params = {"hidden": [], "output": None}
    for i in range(num_hidden_layers):
        in_f = input_size if i == 0 else hidden_size
        key, kw, kb = jax.random.split(key, 3)
        w = _kaiming_uniform(kw, hidden_size, in_f)
        b = _linear_bias(kb, in_f, hidden_size)
        params["hidden"].append((w, b))
    key, kw, kb = jax.random.split(key, 3)
    w = _kaiming_uniform(kw, output_size, hidden_size)
    b = _linear_bias(kb, hidden_size, output_size)
    params["output"] = (w, b)
    return params


def pack_params(params):
    """One-time prep outside the hot path: transpose weights to (in, out) and
    stack all layers (hidden layers + output layer)."""
    ws, bs = [], []
    for (w, b) in params["hidden"]:
        ws.append(w.T)
        bs.append(b)
    wo, bo = params["output"]
    ws.append(wo.T)
    bs.append(bo)
    w_stack = jnp.stack(ws).astype(jnp.float32)              # (L, in, out)
    b_stack = jnp.stack(bs).astype(jnp.float32)[:, None, :]  # (L, 1, out)
    return w_stack, b_stack


# ------------------------------ forward pass ---------------------------------
def flexible_network_forward(packed_params, x, activation_function="relu"):
    """Mirrors FlexibleNetwork.forward: returns (activations, output)."""
    if activation_function not in ("relu", "step"):
        raise ValueError("Invalid activation function. Choose 'relu' or 'step'.")
    w_stack, b_stack = packed_params
    L = w_stack.shape[0]

    x_flat = x.reshape(x.shape[0], -1).astype(jnp.float32)
    out_stack = mlp_forward_pallas(
        x_flat, w_stack, b_stack, activation=activation_function
    )
    activations = [x_flat] + [out_stack[i] for i in range(L - 1)]
    output = out_stack[L - 1]
    return activations, output


# ---------------------------------- main --------------------------------------
if __name__ == "__main__":
    # small shapes consistent with the module's forward (flattened image -> MLP)
    B = 8
    input_size = hidden_size = output_size = 256   # 1x16x16 flattened = 256
    num_hidden_layers = 4

    key = jax.random.PRNGKey(0)
    key, kx, kp = jax.random.split(key, 3)
    x = jax.random.normal(kx, (B, 1, 16, 16), jnp.float32)   # NCHW-like input

    params = init_flexible_network(
        kp, input_size, hidden_size, output_size, num_hidden_layers
    )
    packed = pack_params(params)   # one-time transpose + stack

    # ---- relu path ----
    activations, output = flexible_network_forward(packed, x, "relu")
    jax.block_until_ready(output)
    for a in activations:
        jax.block_until_ready(a)

    # pure-JAX reference
    xf = x.reshape(B, -1)
    h_ref = xf
    for (w, b) in params["hidden"]:
        h_ref = jnp.maximum(h_ref @ w.T + b, 0.0)
    out_ref = h_ref @ params["output"][0].T + params["output"][1]
    assert jnp.allclose(output, out_ref, atol=1e-4, rtol=1e-4)
    assert jnp.allclose(activations[-1], h_ref, atol=1e-4, rtol=1e-4)
    assert output.shape == (B, output_size)
    assert len(activations) == num_hidden_layers + 1

    # ---- step path (fused inside the kernel too) ----
    acts_step, out_step = flexible_network_forward(packed, x, "step")
    jax.block_until_ready(out_step)
    h_s = xf
    for (w, b) in params["hidden"]:
        h_s = jnp.where(h_s @ w.T + b > 0, 1.0, 0.0)
    out_s_ref = h_s @ params["output"][0].T + params["output"][1]
    assert jnp.allclose(out_step, out_s_ref, atol=1e-4, rtol=1e-4)
    assert jnp.allclose(acts_step[-1], h_s, atol=1e-4, rtol=1e-4)

    print("KERNEL_OK")
</pallas_src>

<mosaic_0001>
module attributes {stable_mosaic.version = 11 : i64} {
  func.func @_mlp_fused_kernel(%arg0: i32, %arg1: memref<8x256xf32, #tpu.memory_space<vmem>>, %arg2: memref<5x256x256xf32, #tpu.memory_space<vmem>>, %arg3: memref<5x1x256xf32, #tpu.memory_space<vmem>>, %arg4: memref<5x8x256xf32, #tpu.memory_space<vmem>>) attributes {dimension_semantics = [#tpu.dimension_semantics<arbitrary>], iteration_bounds = array<i64: 1>, scalar_prefetch = 0 : i64, scratch_operands = 0 : i64, tpu.core_type = #tpu.core_type<tc>, window_params = [{pipeline_mode = #tpu.pipeline_mode<synchronous>, transform_indices = @transform_0, window_bounds = array<i64: 8, 256>}, {pipeline_mode = #tpu.pipeline_mode<synchronous>, transform_indices = @transform_1, window_bounds = array<i64: 5, 256, 256>}, {pipeline_mode = #tpu.pipeline_mode<synchronous>, transform_indices = @transform_2, window_bounds = array<i64: 5, 1, 256>}, {pipeline_mode = #tpu.pipeline_mode<synchronous>, transform_indices = @transform_3, window_bounds = array<i64: 5, 8, 256>}]} {
    %c0 = arith.constant 0 : index
    %c0_0 = arith.constant 0 : index
    %0 = vector.load %arg1[%c0, %c0_0] : memref<8x256xf32, #tpu.memory_space<vmem>>, vector<8x256xf32>
    %c0_1 = arith.constant 0 : index
    %c0_2 = arith.constant 0 : index
    %c0_3 = arith.constant 0 : index
    %1 = vector.load %arg2[%c0_1, %c0_2, %c0_3] : memref<5x256x256xf32, #tpu.memory_space<vmem>>, vector<1x256x256xf32>
    %2 = vector.shape_cast %1 : vector<1x256x256xf32> to vector<256x256xf32>
    %cst = arith.constant dense<0.000000e+00> : vector<8x256xf32>
    %3 = tpu.matmul %0, %2, %cst {dimension_numbers = #tpu.dot_dimension_numbers<[1], [0], [0], [1], [0, 0, 1, 1], [], []>} : vector<8x256xf32>, vector<256x256xf32>, vector<8x256xf32> -> vector<8x256xf32>
    %c0_4 = arith.constant 0 : index
    %c0_5 = arith.constant 0 : index
    %c0_6 = arith.constant 0 : index
    %4 = vector.load %arg3[%c0_4, %c0_5, %c0_6] : memref<5x1x256xf32, #tpu.memory_space<vmem>>, vector<1x1x256xf32>
    %5 = vector.shape_cast %4 : vector<1x1x256xf32> to vector<1x256xf32>
    %6 = vector.broadcast %5 : vector<1x256xf32> to vector<8x256xf32>
    %7 = arith.addf %3, %6 : vector<8x256xf32>
    %cst_7 = arith.constant 0.000000e+00 : f32
    %8 = vector.broadcast %cst_7 : f32 to vector<8x256xf32>
    %9 = arith.maximumf %7, %8 : vector<8x256xf32>
    %c0_8 = arith.constant 0 : index
    %c0_9 = arith.constant 0 : index
    %c0_10 = arith.constant 0 : index
    %10 = vector.load %arg4[%c0_8, %c0_9, %c0_10] : memref<5x8x256xf32, #tpu.memory_space<vmem>>, vector<1x8x256xf32>
    %11 = vector.shape_cast %10 : vector<1x8x256xf32> to vector<8x256xf32>
    %12 = vector.shape_cast %9 : vector<8x256xf32> to vector<1x8x256xf32>
    tpu.vector_store %arg4[%c0_8, %c0_9, %c0_10], %12 {strides = array<i32>} : memref<5x8x256xf32, #tpu.memory_space<vmem>>, vector<1x8x256xf32>,
    %c1 = arith.constant 1 : index
    %c0_11 = arith.constant 0 : index
    %c0_12 = arith.constant 0 : index
    %13 = vector.load %arg2[%c1, %c0_11, %c0_12] : memref<5x256x256xf32, #tpu.memory_space<vmem>>, vector<1x256x256xf32>
    %14 = vector.shape_cast %13 : vector<1x256x256xf32> to vector<256x256xf32>
    %cst_13 = arith.constant dense<0.000000e+00> : vector<8x256xf32>
    %15 = tpu.matmul %9, %14, %cst_13 {dimension_numbers = #tpu.dot_dimension_numbers<[1], [0], [0], [1], [0, 0, 1, 1], [], []>} : vector<8x256xf32>, vector<256x256xf32>, vector<8x256xf32> -> vector<8x256xf32>
    %c1_14 = arith.constant 1 : index
    %c0_15 = arith.constant 0 : index
    %c0_16 = arith.constant 0 : index
    %16 = vector.load %arg3[%c1_14, %c0_15, %c0_16] : memref<5x1x256xf32, #tpu.memory_space<vmem>>, vector<1x1x256xf32>
    %17 = vector.shape_cast %16 : vector<1x1x256xf32> to vector<1x256xf32>
    %18 = vector.broadcast %17 : vector<1x256xf32> to vector<8x256xf32>
    %19 = arith.addf %15, %18 : vector<8x256xf32>
    %cst_17 = arith.constant 0.000000e+00 : f32
    %20 = vector.broadcast %cst_17 : f32 to vector<8x256xf32>
    %21 = arith.maximumf %19, %20 : vector<8x256xf32>
    %c1_18 = arith.constant 1 : index
    %c0_19 = arith.constant 0 : index
    %c0_20 = arith.constant 0 : index
    %22 = vector.load %arg4[%c1_18, %c0_19, %c0_20] : memref<5x8x256xf32, #tpu.memory_space<vmem>>, vector<1x8x256xf32>
    %23 = vector.shape_cast %22 : vector<1x8x256xf32> to vector<8x256xf32>
    %24 = vector.shape_cast %21 : vector<8x256xf32> to vector<1x8x256xf32>
    tpu.vector_store %arg4[%c1_18, %c0_19, %c0_20], %24 {strides = array<i32>} : memref<5x8x256xf32, #tpu.memory_space<vmem>>, vector<1x8x256xf32>,
    %c2 = arith.constant 2 : index
    %c0_21 = arith.constant 0 : index
    %c0_22 = arith.constant 0 : index
    %25 = vector.load %arg2[%c2, %c0_21, %c0_22] : memref<5x256x256xf32, #tpu.memory_space<vmem>>, vector<1x256x256xf32>
    %26 = vector.shape_cast %25 : vector<1x256x256xf32> to vector<256x256xf32>
    %cst_23 = arith.constant dense<0.000000e+00> : vector<8x256xf32>
    %27 = tpu.matmul %21, %26, %cst_23 {dimension_numbers = #tpu.dot_dimension_numbers<[1], [0], [0], [1], [0, 0, 1, 1], [], []>} : vector<8x256xf32>, vector<256x256xf32>, vector<8x256xf32> -> vector<8x256xf32>
    %c2_24 = arith.constant 2 : index
    %c0_25 = arith.constant 0 : index
    %c0_26 = arith.constant 0 : index
    %28 = vector.load %arg3[%c2_24, %c0_25, %c0_26] : memref<5x1x256xf32, #tpu.memory_space<vmem>>, vector<1x1x256xf32>
    %29 = vector.shape_cast %28 : vector<1x1x256xf32> to vector<1x256xf32>
    %30 = vector.broadcast %29 : vector<1x256xf32> to vector<8x256xf32>
    %31 = arith.addf %27, %30 : vector<8x256xf32>
    %cst_27 = arith.constant 0.000000e+00 : f32
    %32 = vector.broadcast %cst_27 : f32 to vector<8x256xf32>
    %33 = arith.maximumf %31, %32 : vector<8x256xf32>
    %c2_28 = arith.constant 2 : index
    %c0_29 = arith.constant 0 : index
    %c0_30 = arith.constant 0 : index
    %34 = vector.load %arg4[%c2_28, %c0_29, %c0_30] : memref<5x8x256xf32, #tpu.memory_space<vmem>>, vector<1x8x256xf32>
    %35 = vector.shape_cast %34 : vector<1x8x256xf32> to vector<8x256xf32>
    %36 = vector.shape_cast %33 : vector<8x256xf32> to vector<1x8x256xf32>
    tpu.vector_store %arg4[%c2_28, %c0_29, %c0_30], %36 {strides = array<i32>} : memref<5x8x256xf32, #tpu.memory_space<vmem>>, vector<1x8x256xf32>,
    %c3 = arith.constant 3 : index
    %c0_31 = arith.constant 0 : index
    %c0_32 = arith.constant 0 : index
    %37 = vector.load %arg2[%c3, %c0_31, %c0_32] : memref<5x256x256xf32, #tpu.memory_space<vmem>>, vector<1x256x256xf32>
    %38 = vector.shape_cast %37 : vector<1x256x256xf32> to vector<256x256xf32>
    %cst_33 = arith.constant dense<0.000000e+00> : vector<8x256xf32>
    %39 = tpu.matmul %33, %38, %cst_33 {dimension_numbers = #tpu.dot_dimension_numbers<[1], [0], [0], [1], [0, 0, 1, 1], [], []>} : vector<8x256xf32>, vector<256x256xf32>, vector<8x256xf32> -> vector<8x256xf32>
    %c3_34 = arith.constant 3 : index
    %c0_35 = arith.constant 0 : index
    %c0_36 = arith.constant 0 : index
    %40 = vector.load %arg3[%c3_34, %c0_35, %c0_36] : memref<5x1x256xf32, #tpu.memory_space<vmem>>, vector<1x1x256xf32>
    %41 = vector.shape_cast %40 : vector<1x1x256xf32> to vector<1x256xf32>
    %42 = vector.broadcast %41 : vector<1x256xf32> to vector<8x256xf32>
    %43 = arith.addf %39, %42 : vector<8x256xf32>
    %cst_37 = arith.constant 0.000000e+00 : f32
    %44 = vector.broadcast %cst_37 : f32 to vector<8x256xf32>
    %45 = arith.maximumf %43, %44 : vector<8x256xf32>
    %c3_38 = arith.constant 3 : index
    %c0_39 = arith.constant 0 : index
    %c0_40 = arith.constant 0 : index
    %46 = vector.load %arg4[%c3_38, %c0_39, %c0_40] : memref<5x8x256xf32, #tpu.memory_space<vmem>>, vector<1x8x256xf32>
    %47 = vector.shape_cast %46 : vector<1x8x256xf32> to vector<8x256xf32>
    %48 = vector.shape_cast %45 : vector<8x256xf32> to vector<1x8x256xf32>
    tpu.vector_store %arg4[%c3_38, %c0_39, %c0_40], %48 {strides = array<i32>} : memref<5x8x256xf32, #tpu.memory_space<vmem>>, vector<1x8x256xf32>,
    %c4 = arith.constant 4 : index
    %c0_41 = arith.constant 0 : index
    %c0_42 = arith.constant 0 : index
    %49 = vector.load %arg2[%c4, %c0_41, %c0_42] : memref<5x256x256xf32, #tpu.memory_space<vmem>>, vector<1x256x256xf32>
    %50 = vector.shape_cast %49 : vector<1x256x256xf32> to vector<256x256xf32>
    %cst_43 = arith.constant dense<0.000000e+00> : vector<8x256xf32>
    %51 = tpu.matmul %45, %50, %cst_43 {dimension_numbers = #tpu.dot_dimension_numbers<[1], [0], [0], [1], [0, 0, 1, 1], [], []>} : vector<8x256xf32>, vector<256x256xf32>, vector<8x256xf32> -> vector<8x256xf32>
    %c4_44 = arith.constant 4 : index
    %c0_45 = arith.constant 0 : index
    %c0_46 = arith.constant 0 : index
    %52 = vector.load %arg3[%c4_44, %c0_45, %c0_46] : memref<5x1x256xf32, #tpu.memory_space<vmem>>, vector<1x1x256xf32>
    %53 = vector.shape_cast %52 : vector<1x1x256xf32> to vector<1x256xf32>
    %54 = vector.broadcast %53 : vector<1x256xf32> to vector<8x256xf32>
    %55 = arith.addf %51, %54 : vector<8x256xf32>
    %c4_47 = arith.constant 4 : index
    %c0_48 = arith.constant 0 : index
    %c0_49 = arith.constant 0 : index
    %56 = vector.load %arg4[%c4_47, %c0_48, %c0_49] : memref<5x8x256xf32, #tpu.memory_space<vmem>>, vector<1x8x256xf32>
    %57 = vector.shape_cast %56 : vector<1x8x256xf32> to vector<8x256xf32>
    %58 = vector.shape_cast %55 : vector<8x256xf32> to vector<1x8x256xf32>
    tpu.vector_store %arg4[%c4_47, %c0_48, %c0_49], %58 {strides = array<i32>} : memref<5x8x256xf32, #tpu.memory_space<vmem>>, vector<1x8x256xf32>,
    return
  }
  func.func @transform_0(%arg0: i32) -> (i32, i32) {
    %c0_i32 = arith.constant 0 : i32
    %c0_i32_0 = arith.constant 0 : i32
    %c0_i32_1 = arith.constant 0 : i32
    return %c0_i32, %c0_i32_0 : i32, i32
  }
  func.func @transform_1(%arg0: i32) -> (i32, i32, i32) {
    %c0_i32 = arith.constant 0 : i32
    %c0_i32_0 = arith.constant 0 : i32
    %c0_i32_1 = arith.constant 0 : i32
    %c0_i32_2 = arith.constant 0 : i32
    return %c0_i32, %c0_i32_0, %c0_i32_1 : i32, i32, i32
  }
  func.func @transform_2(%arg0: i32) -> (i32, i32, i32) {
    %c0_i32 = arith.constant 0 : i32
    %c0_i32_0 = arith.constant 0 : i32
    %c0_i32_1 = arith.constant 0 : i32
    %c0_i32_2 = arith.constant 0 : i32
    return %c0_i32, %c0_i32_0, %c0_i32_1 : i32, i32, i32
  }
  func.func @transform_3(%arg0: i32) -> (i32, i32, i32) {
    %c0_i32 = arith.constant 0 : i32
    %c0_i32_0 = arith.constant 0 : i32
    %c0_i32_1 = arith.constant 0 : i32
    %c0_i32_2 = arith.constant 0 : i32
    return %c0_i32, %c0_i32_0, %c0_i32_1 : i32, i32, i32
  }
}

</mosaic_0001>

<llo_original>
// kernel: tpu_custom_call.1
$region0: #{tpu_custom_call.1}
  #allocation0 [shape = 'u32[]', space=smem, size = 0x4, offset = 0x4, fixed_abs, tag = 'smem constant byte address 0x4 - core index']
  #allocation1 [shape = 'u32[144,128]{1,0:T(1,128)}', space=vmem, size = 0x12000, scoped, tag = 'internal scratch']
  %s0 = inlined_call_operand.hbm [shape: f32[8,256], index: 0, kind: input, shape index: {}]
  %s1 = inlined_call_operand.hbm [shape: f32[5,256,256], index: 1, kind: input, shape index: {}]
  %s2 = inlined_call_operand.hbm [shape: f32[5,1,256], index: 2, kind: input, shape index: {}]
  %s3 = inlined_call_operand.hbm [shape: f32[5,8,256], index: 3, kind: output, shape index: {}]
  %s4 = sld [smem:[#allocation0]]
  $region34: #{tpu_custom_call.1} parent=0
    _
  %s6 = ssub.s32 1, %s4
  %s7 = scalar_select 0, %s6, %s4
  $region1: #{tpu_custom_call.1} parent=0
    #allocation2 [shape = 'u8[8192]{0}', space=vmem, size = 0x2000, scoped, tag = 'input window, operand 0, single buffered']
    #allocation3 [shape = 's32[1]{0}', space=sflag, size = 0x4, scoped, tag = 'scoped memory for tpu_custom_call.1']
    #allocation4 [shape = 's32[1]{0}', space=sflag, size = 0x4, scoped, tag = 'scoped memory for tpu_custom_call.1']
    #allocation5 [shape = 'u8[1310720]{0}', space=vmem, size = 0x140000, scoped, tag = 'input window, operand 1, single buffered']
    #allocation6 [shape = 's32[1]{0}', space=sflag, size = 0x4, scoped, tag = 'scoped memory for tpu_custom_call.1']
    #allocation7 [shape = 'u8[5120]{0}', space=vmem, size = 0x1400, scoped, tag = 'input window, operand 2, single buffered']
    #allocation8 [shape = 'u8[40960]{0}', space=vmem, size = 0xa000, scoped, tag = 'output window, operand 0, single buffered']
    %8 = vsyncpa [#allocation3], 0
    %9 = vsyncpa [#allocation6], 0
    %10 = vsyncpa [#allocation4], 0
    // Predicated region
    $region2: #{tpu_custom_call.1} parent=1 // pred_check
      _
    $region3: #{tpu_custom_call.1} parent=1 // pred_check_branch
      %12 = sbr.rel (0) target = $region5
    $region4: #{tpu_custom_call.1} parent=1 // pred_region
      %s14 = ssub.s32 256, 256
      %15 = vsyncadd [#allocation3], %s14
      %s17 = sshll.u32 [#allocation2], 4
      %s18 = int_to_ptr.vmem [resolvable:$true] %s17
      %20 = dma.hbm_to_vmem [thread:$0]  %s0, 256, %s18, [#allocation3]
    $region5: #{tpu_custom_call.1} parent=1 // pred_fallthru
      _
    // Predicated region
    $region6: #{tpu_custom_call.1} parent=1 // pred_check
      _
    $region7: #{tpu_custom_call.1} parent=1 // pred_check_branch
      %22 = sbr.rel (0) target = $region9
    $region8: #{tpu_custom_call.1} parent=1 // pred_region
      %s24 = ssub.s32 40960, 40960
      %25 = vsyncadd [#allocation6], %s24
      %s26 = sshll.u32 [#allocation5], 4
      %s27 = int_to_ptr.vmem [resolvable:$true] %s26
      %32 = dma.hbm_to_vmem [thread:$0]  %s1, 40960, %s27, [#allocation6], 256, 256, 16
    $region9: #{tpu_custom_call.1} parent=1 // pred_fallthru
      _
    // Predicated region
    $region10: #{tpu_custom_call.1} parent=1 // pred_check
      _
    $region11: #{tpu_custom_call.1} parent=1 // pred_check_branch
      %34 = sbr.rel (0) target = $region13
    $region12: #{tpu_custom_call.1} parent=1 // pred_region
      %s36 = ssub.s32 160, 160
      %37 = vsyncadd [#allocation6], %s36
      %s38 = sshll.u32 [#allocation7], 4
      %s39 = int_to_ptr.vmem [resolvable:$true] %s38
      %44 = dma.hbm_to_vmem [thread:$0]  %s2, 160, %s39, [#allocation6], 32, 32, 2
    $region13: #{tpu_custom_call.1} parent=1 // pred_fallthru
      _
    // Predicated region
    $region14: #{tpu_custom_call.1} parent=1 // pred_check
      _
    $region15: #{tpu_custom_call.1} parent=1 // pred_check_branch
      %46 = sbr.rel (0) target = $region17
    $region16: #{tpu_custom_call.1} parent=1 // pred_region
      %47 = dma.done [#allocation3], 256
    $region17: #{tpu_custom_call.1} parent=1 // pred_fallthru
      _
    // Predicated region
    $region18: #{tpu_custom_call.1} parent=1 // pred_check
      _
    $region19: #{tpu_custom_call.1} parent=1 // pred_check_branch
      %49 = sbr.rel (0) target = $region21
    $region20: #{tpu_custom_call.1} parent=1 // pred_region
      %50 = dma.done [#allocation6], 40960
    $region21: #{tpu_custom_call.1} parent=1 // pred_fallthru
      _
    // Predicated region
    $region22: #{tpu_custom_call.1} parent=1 // pred_check
      _
    $region23: #{tpu_custom_call.1} parent=1 // pred_check_branch
      %52 = sbr.rel (0) target = $region25
    $region24: #{tpu_custom_call.1} parent=1 // pred_region
      %53 = dma.done [#allocation6], 160
    $region25: #{tpu_custom_call.1} parent=1 // pred_fallthru
      _
    %v54 = vld [vmem:[#allocation2] sm:$0xff]
    %v55 = vld [vmem:[#allocation2 + $0x8] sm:$0xff]
    %v56 = vld [vmem:[#allocation5] sm:$0xff]
    %v57 = vld [vmem:[#allocation5 + $0x8] sm:$0xff]
    %v58 = vld [vmem:[#allocation5 + $0x10] sm:$0xff]
    %v59 = vld [vmem:[#allocation5 + $0x18] sm:$0xff]
    %v60 = vld [vmem:[#allocation5 + $0x20] sm:$0xff]
    %v61 = vld [vmem:[#allocation5 + $0x28] sm:$0xff]
    %v62 = vld [vmem:[#allocation5 + $0x30] sm:$0xff]
    %v63 = vld [vmem:[#allocation5 + $0x38] sm:$0xff]
    %v64 = vld [vmem:[#allocation5 + $0x40] sm:$0xff]
    %v65 = vld [vmem:[#allocation5 + $0x48] sm:$0xff]
    %v66 = vld [vmem:[#allocation5 + $0x50] sm:$0xff]
    %v67 = vld [vmem:[#allocation5 + $0x58] sm:$0xff]
    %v68 = vld [vmem:[#allocation5 + $0x60] sm:$0xff]
    %v69 = vld [vmem:[#allocation5 + $0x68] sm:$0xff]
    %v70 = vld [vmem:[#allocation5 + $0x70] sm:$0xff]
    %v71 = vld [vmem:[#allocation5 + $0x78] sm:$0xff]
    %v72 = vld [vmem:[#allocation5 + $0x80] sm:$0xff]
    %v73 = vld [vmem:[#allocation5 + $0x88] sm:$0xff]
    %v74 = vld [vmem:[#allocation5 + $0x90] sm:$0xff]
    %v75 = vld [vmem:[#allocation5 + $0x98] sm:$0xff]
    %v76 = vld [vmem:[#allocation5 + $0xa0] sm:$0xff]
    %v77 = vld [vmem:[#allocation5 + $0xa8] sm:$0xff]
    %v78 = vld [vmem:[#allocation5 + $0xb0] sm:$0xff]
    %v79 = vld [vmem:[#allocation5 + $0xb8] sm:$0xff]
    %v80 = vld [vmem:[#allocation5 + $0xc0] sm:$0xff]
    %v81 = vld [vmem:[#allocation5 + $0xc8] sm:$0xff]
    %v82 = vld [vmem:[#allocation5 + $0xd0] sm:$0xff]
    %v83 = vld [vmem:[#allocation5 + $0xd8] sm:$0xff]
    %v84 = vld [vmem:[#allocation5 + $0xe0] sm:$0xff]
    %v85 = vld [vmem:[#allocation5 + $0xe8] sm:$0xff]
    %v86 = vld [vmem:[#allocation5 + $0xf0] sm:$0xff]
    %v87 = vld [vmem:[#allocation5 + $0xf8] sm:$0xff]
    %v88 = vld [vmem:[#allocation5 + $0x100] sm:$0xff]
    %v89 = vld [vmem:[#allocation5 + $0x108] sm:$0xff]
    %v90 = vld [vmem:[#allocation5 + $0x110] sm:$0xff]
    %v91 = vld [vmem:[#allocation5 + $0x118] sm:$0xff]
    %v92 = vld [vmem:[#allocation5 + $0x120] sm:$0xff]
    %v93 = vld [vmem:[#allocation5 + $0x128] sm:$0xff]
    %v94 = vld [vmem:[#allocation5 + $0x130] sm:$0xff]
    %v95 = vld [vmem:[#allocation5 + $0x138] sm:$0xff]
    %v96 = vld [vmem:[#allocation5 + $0x140] sm:$0xff]
    %v97 = vld [vmem:[#allocation5 + $0x148] sm:$0xff]
    %v98 = vld [vmem:[#allocation5 + $0x150] sm:$0xff]
    %v99 = vld [vmem:[#allocation5 + $0x158] sm:$0xff]
    %v100 = vld [vmem:[#allocation5 + $0x160] sm:$0xff]
    %v101 = vld [vmem:[#allocation5 + $0x168] sm:$0xff]
    %v102 = vld [vmem:[#allocation5 + $0x170] sm:$0xff]
    %v103 = vld [vmem:[#allocation5 + $0x178] sm:$0xff]
    %v104 = vld [vmem:[#allocation5 + $0x180] sm:$0xff]
    %v105 = vld [vmem:[#allocation5 + $0x188] sm:$0xff]
    %v106 = vld [vmem:[#allocation5 + $0x190] sm:$0xff]
    %v107 = vld [vmem:[#allocation5 + $0x198] sm:$0xff]
    %v108 = vld [vmem:[#allocation5 + $0x1a0] sm:$0xff]
    %v109 = vld [vmem:[#allocation5 + $0x1a8] sm:$0xff]
    %v110 = vld [vmem:[#allocation5 + $0x1b0] sm:$0xff]
    %v111 = vld [vmem:[#allocation5 + $0x1b8] sm:$0xff]
    %v112 = vld [vmem:[#allocation5 + $0x1c0] sm:$0xff]
    %v113 = vld [vmem:[#allocation5 + $0x1c8] sm:$0xff]
    %v114 = vld [vmem:[#allocation5 + $0x1d0] sm:$0xff]
    %v115 = vld [vmem:[#allocation5 + $0x1d8] sm:$0xff]
    %v116 = vld [vmem:[#allocation5 + $0x1e0] sm:$0xff]
    %v117 = vld [vmem:[#allocation5 + $0x1e8] sm:$0xff]
    %v118 = vld [vmem:[#allocation5 + $0x1f0] sm:$0xff]
    %v119 = vld [vmem:[#allocation5 + $0x1f8] sm:$0xff]
    %v120 = vld [vmem:[#allocation7] sm:$0x3]
    %v122 = vlaneseq
    %v123 = vshrl.u32 %v122, 7
    %v124 = vsub.s32 0, %v123
    %v125 = vrot.slane %v120, %v124
    %v126 = vlaneseq
    %v127 = vshrl.u32 %v126, 7
    %v128 = vsub.s32 1, %v127
    %v129 = vrot.slane %v120, %v128
    %132 = vmatprep.subr.mxu0 %v87
    %133 = vmatpush1.msra.mxu0 %v86
    %134 = vmatprep.subr.mxu0 %v85
    %135 = vmatpush1.msra.mxu0 %v84
    %136 = vmatprep.subr.mxu0 %v83
    %137 = vmatpush1.msra.mxu0 %v82
    %138 = vmatprep.subr.mxu0 %v81
    %139 = vmatpush1.msra.mxu0 %v80
    %140 = vmatprep.subr.mxu0 %v79
    %141 = vmatpush1.msra.mxu0 %v78
    %142 = vmatprep.subr.mxu0 %v77
    %143 = vmatpush1.msra.mxu0 %v76
    %144 = vmatprep.subr.mxu0 %v75
    %145 = vmatpush1.msra.mxu0 %v74
    %146 = vmatprep.subr.mxu0 %v73
    %147 = vmatpush1.msra.mxu0 %v72
    %148 = vmatprep.subr.mxu0 %v71
    %149 = vmatpush1.msra.mxu0 %v70
    %150 = vmatprep.subr.mxu0 %v69
    %151 = vmatpush1.msra.mxu0 %v68
    %152 = vmatprep.subr.mxu0 %v67
    %153 = vmatpush1.msra.mxu0 %v66
    %154 = vmatprep.subr.mxu0 %v65
    %155 = vmatpush1.msra.mxu0 %v64
    %156 = vmatprep.subr.mxu0 %v63
    %157 = vmatpush1.msra.mxu0 %v62
    %158 = vmatprep.subr.mxu0 %v61
    %159 = vmatpush1.msra.mxu0 %v60
    %160 = vmatprep.subr.mxu0 %v59
    %161 = vmatpush1.msra.mxu0 %v58
    %162 = vmatprep.subr.mxu0 %v57
    %163 = vmatpush1.msra.mxu0 %v56
    %164 = vmatprep.subr.mxu0 %v119
    %165 = vmatpush2.msra.mxu0 %v118
    %166 = vmatprep.subr.mxu0 %v117
    %167 = vmatpush2.msra.mxu0 %v116
    %168 = vmatprep.subr.mxu0 %v115
    %169 = vmatpush2.msra.mxu0 %v114
    %170 = vmatprep.subr.mxu0 %v113
    %171 = vmatpush2.msra.mxu0 %v112
    %172 = vmatprep.subr.mxu0 %v111
    %173 = vmatpush2.msra.mxu0 %v110
    %174 = vmatprep.subr.mxu0 %v109
    %175 = vmatpush2.msra.mxu0 %v108
    %176 = vmatprep.subr.mxu0 %v107
    %177 = vmatpush2.msra.mxu0 %v106
    %178 = vmatprep.subr.mxu0 %v105
    %179 = vmatpush2.msra.mxu0 %v104
    %180 = vmatprep.subr.mxu0 %v103
    %181 = vmatpush2.msra.mxu0 %v102
    %182 = vmatprep.subr.mxu0 %v101
    %183 = vmatpush2.msra.mxu0 %v100
    %184 = vmatprep.subr.mxu0 %v99
    %185 = vmatpush2.msra.mxu0 %v98
    %186 = vmatprep.subr.mxu0 %v97
    %187 = vmatpush2.msra.mxu0 %v96
    %188 = vmatprep.subr.mxu0 %v95
    %189 = vmatpush2.msra.mxu0 %v94
    %190 = vmatprep.subr.mxu0 %v93
    %191 = vmatpush2.msra.mxu0 %v92
    %192 = vmatprep.subr.mxu0 %v91
    %193 = vmatpush2.msra.mxu0 %v90
    %194 = vmatprep.subr.mxu0 %v89
    %195 = vmatpush2.msra.mxu0 %v88
    %196 = vmatprep.mubr.f32.mxu0 %v55
    %197 = vmatmul.mubr.f32.gmra.mxu0 %v54
    %v198 = vpop.f32.mrf.mxu0
    %v199 = vadd.f32 %v125, %v198
    %v200 = vpop.f32.mrf.mxu0
    %v201 = vadd.f32 %v129, %v200
    %202 = vdwg.mxu0
    %v203 = vmax.f32 %v199, 0.0
    %v204 = vmax.f32 %v201, 0.0
    %205 = vst [vmem:[#allocation8] sm:$0xff] %v203
    %206 = vst [vmem:[#allocation8 + $0x8] sm:$0xff] %v204
    %s207 = scalar_lea.vmem [#allocation5], 512
    %v208 = vld [vmem:[%s207] sm:$0xff]
    %v209 = vld [vmem:[%s207 + $0x8] sm:$0xff]
    %v210 = vld [vmem:[%s207 + $0x10] sm:$0xff]
    %v211 = vld [vmem:[%s207 + $0x18] sm:$0xff]
    %v212 = vld [vmem:[%s207 + $0x20] sm:$0xff]
    %v213 = vld [vmem:[%s207 + $0x28] sm:$0xff]
    %v214 = vld [vmem:[%s207 + $0x30] sm:$0xff]
    %v215 = vld [vmem:[%s207 + $0x38] sm:$0xff]
    %v216 = vld [vmem:[%s207 + $0x40] sm:$0xff]
    %v217 = vld [vmem:[%s207 + $0x48] sm:$0xff]
    %v218 = vld [vmem:[%s207 + $0x50] sm:$0xff]
    %v219 = vld [vmem:[%s207 + $0x58] sm:$0xff]
    %v220 = vld [vmem:[%s207 + $0x60] sm:$0xff]
    %v221 = vld [vmem:[%s207 + $0x68] sm:$0xff]
    %v222 = vld [vmem:[%s207 + $0x70] sm:$0xff]
    %v223 = vld [vmem:[%s207 + $0x78] sm:$0xff]
    %v224 = vld [vmem:[%s207 + $0x80] sm:$0xff]
    %v225 = vld [vmem:[%s207 + $0x88] sm:$0xff]
    %v226 = vld [vmem:[%s207 + $0x90] sm:$0xff]
    %v227 = vld [vmem:[%s207 + $0x98] sm:$0xff]
    %v228 = vld [vmem:[%s207 + $0xa0] sm:$0xff]
    %v229 = vld [vmem:[%s207 + $0xa8] sm:$0xff]
    %v230 = vld [vmem:[%s207 + $0xb0] sm:$0xff]
    %v231 = vld [vmem:[%s207 + $0xb8] sm:$0xff]
    %v232 = vld [vmem:[%s207 + $0xc0] sm:$0xff]
    %v233 = vld [vmem:[%s207 + $0xc8] sm:$0xff]
    %v234 = vld [vmem:[%s207 + $0xd0] sm:$0xff]
    %v235 = vld [vmem:[%s207 + $0xd8] sm:$0xff]
    %v236 = vld [vmem:[%s207 + $0xe0] sm:$0xff]
    %v237 = vld [vmem:[%s207 + $0xe8] sm:$0xff]
    %v238 = vld [vmem:[%s207 + $0xf0] sm:$0xff]
    %v239 = vld [vmem:[%s207 + $0xf8] sm:$0xff]
    %v240 = vld [vmem:[%s207 + $0x100] sm:$0xff]
    %v241 = vld [vmem:[%s207 + $0x108] sm:$0xff]
    %v242 = vld [vmem:[%s207 + $0x110] sm:$0xff]
    %v243 = vld [vmem:[%s207 + $0x118] sm:$0xff]
    %v244 = vld [vmem:[%s207 + $0x120] sm:$0xff]
    %v245 = vld [vmem:[%s207 + $0x128] sm:$0xff]
    %v246 = vld [vmem:[%s207 + $0x130] sm:$0xff]
    %v247 = vld [vmem:[%s207 + $0x138] sm:$0xff]
    %v248 = vld [vmem:[%s207 + $0x140] sm:$0xff]
    %v249 = vld [vmem:[%s207 + $0x148] sm:$0xff]
    %v250 = vld [vmem:[%s207 + $0x150] sm:$0xff]
    %v251 = vld [vmem:[%s207 + $0x158] sm:$0xff]
    %v252 = vld [vmem:[%s207 + $0x160] sm:$0xff]
    %v253 = vld [vmem:[%s207 + $0x168] sm:$0xff]
    %v254 = vld [vmem:[%s207 + $0x170] sm:$0xff]
    %v255 = vld [vmem:[%s207 + $0x178] sm:$0xff]
    %v256 = vld [vmem:[%s207 + $0x180] sm:$0xff]
    %v257 = vld [vmem:[%s207 + $0x188] sm:$0xff]
    %v258 = vld [vmem:[%s207 + $0x190] sm:$0xff]
    %v259 = vld [vmem:[%s207 + $0x198] sm:$0xff]
    %v260 = vld [vmem:[%s207 + $0x1a0] sm:$0xff]
    %v261 = vld [vmem:[%s207 + $0x1a8] sm:$0xff]
    %v262 = vld [vmem:[%s207 + $0x1b0] sm:$0xff]
    %v263 = vld [vmem:[%s207 + $0x1b8] sm:$0xff]
    %v264 = vld [vmem:[%s207 + $0x1c0] sm:$0xff]
    %v265 = vld [vmem:[%s207 + $0x1c8] sm:$0xff]
    %v266 = vld [vmem:[%s207 + $0x1d0] sm:$0xff]
    %v267 = vld [vmem:[%s207 + $0x1d8] sm:$0xff]
    %v268 = vld [vmem:[%s207 + $0x1e0] sm:$0xff]
    %v269 = vld [vmem:[%s207 + $0x1e8] sm:$0xff]
    %v270 = vld [vmem:[%s207 + $0x1f0] sm:$0xff]
    %v271 = vld [vmem:[%s207 + $0x1f8] sm:$0xff]
    %s272 = scalar_lea.vmem [#allocation7], 2
    %v273 = vld [vmem:[%s272] sm:$0x3]
    %v275 = vlaneseq
    %v276 = vshrl.u32 %v275, 7
    %v277 = vsub.s32 0, %v276
    %v278 = vrot.slane %v273, %v277
    %v279 = vlaneseq
    %v280 = vshrl.u32 %v279, 7
    %v281 = vsub.s32 1, %v280
    %v282 = vrot.slane %v273, %v281
    %285 = vmatprep.subr.mxu0 %v239
    %286 = vmatpush1.msra.mxu0 %v238
    %287 = vmatprep.subr.mxu0 %v237
    %288 = vmatpush1.msra.mxu0 %v236
    %289 = vmatprep.subr.mxu0 %v235
    %290 = vmatpush1.msra.mxu0 %v234
    %291 = vmatprep.subr.mxu0 %v233
    %292 = vmatpush1.msra.mxu0 %v232
    %293 = vmatprep.subr.mxu0 %v231
    %294 = vmatpush1.msra.mxu0 %v230
    %295 = vmatprep.subr.mxu0 %v229
    %296 = vmatpush1.msra.mxu0 %v228
    %297 = vmatprep.subr.mxu0 %v227
    %298 = vmatpush1.msra.mxu0 %v226
    %299 = vmatprep.subr.mxu0 %v225
    %300 = vmatpush1.msra.mxu0 %v224
    %301 = vmatprep.subr.mxu0 %v223
    %302 = vmatpush1.msra.mxu0 %v222
    %303 = vmatprep.subr.mxu0 %v221
    %304 = vmatpush1.msra.mxu0 %v220
    %305 = vmatprep.subr.mxu0 %v219
    %306 = vmatpush1.msra.mxu0 %v218
    %307 = vmatprep.subr.mxu0 %v217
    %308 = vmatpush1.msra.mxu0 %v216
    %309 = vmatprep.subr.mxu0 %v215
    %310 = vmatpush1.msra.mxu0 %v214
    %311 = vmatprep.subr.mxu0 %v213
    %312 = vmatpush1.msra.mxu0 %v212
    %313 = vmatprep.subr.mxu0 %v211
    %314 = vmatpush1.msra.mxu0 %v210
    %315 = vmatprep.subr.mxu0 %v209
    %316 = vmatpush1.msra.mxu0 %v208
    %317 = vmatprep.subr.mxu0 %v271
    %318 = vmatpush2.msra.mxu0 %v270
    %319 = vmatprep.subr.mxu0 %v269
    %320 = vmatpush2.msra.mxu0 %v268
    %321 = vmatprep.subr.mxu0 %v267
    %322 = vmatpush2.msra.mxu0 %v266
    %323 = vmatprep.subr.mxu0 %v265
    %324 = vmatpush2.msra.mxu0 %v264
    %325 = vmatprep.subr.mxu0 %v263
    %326 = vmatpush2.msra.mxu0 %v262
    %327 = vmatprep.subr.mxu0 %v261
    %328 = vmatpush2.msra.mxu0 %v260
    %329 = vmatprep.subr.mxu0 %v259
    %330 = vmatpush2.msra.mxu0 %v258
    %331 = vmatprep.subr.mxu0 %v257
    %332 = vmatpush2.msra.mxu0 %v256
    %333 = vmatprep.subr.mxu0 %v255
    %334 = vmatpush2.msra.mxu0 %v254
    %335 = vmatprep.subr.mxu0 %v253
    %336 = vmatpush2.msra.mxu0 %v252
    %337 = vmatprep.subr.mxu0 %v251
    %338 = vmatpush2.msra.mxu0 %v250
    %339 = vmatprep.subr.mxu0 %v249
    %340 = vmatpush2.msra.mxu0 %v248
    %341 = vmatprep.subr.mxu0 %v247
    %342 = vmatpush2.msra.mxu0 %v246
    %343 = vmatprep.subr.mxu0 %v245
    %344 = vmatpush2.msra.mxu0 %v244
    %345 = vmatprep.subr.mxu0 %v243
    %346 = vmatpush2.msra.mxu0 %v242
    %347 = vmatprep.subr.mxu0 %v241
    %348 = vmatpush2.msra.mxu0 %v240
    %349 = vmatprep.mubr.f32.mxu0 %v204
    %350 = vmatmul.mubr.f32.gmra.mxu0 %v203
    %v351 = vpop.f32.mrf.mxu0
    %v352 = vadd.f32 %v278, %v351
    %v353 = vpop.f32.mrf.mxu0
    %v354 = vadd.f32 %v282, %v353
    %355 = vdwg.mxu0
    %v356 = vmax.f32 %v352, 0.0
    %v357 = vmax.f32 %v354, 0.0
    %s358 = scalar_lea.vmem [#allocation8], 16
    %359 = vst [vmem:[%s358] sm:$0xff] %v356
    %360 = vst [vmem:[%s358 + $0x8] sm:$0xff] %v357
    %s361 = scalar_lea.vmem [#allocation5], 1024
    %v362 = vld [vmem:[%s361] sm:$0xff]
    %v363 = vld [vmem:[%s361 + $0x8] sm:$0xff]
    %v364 = vld [vmem:[%s361 + $0x10] sm:$0xff]
    %v365 = vld [vmem:[%s361 + $0x18] sm:$0xff]
    %v366 = vld [vmem:[%s361 + $0x20] sm:$0xff]
    %v367 = vld [vmem:[%s361 + $0x28] sm:$0xff]
    %v368 = vld [vmem:[%s361 + $0x30] sm:$0xff]
    %v369 = vld [vmem:[%s361 + $0x38] sm:$0xff]
    %v370 = vld [vmem:[%s361 + $0x40] sm:$0xff]
    %v371 = vld [vmem:[%s361 + $0x48] sm:$0xff]
    %v372 = vld [vmem:[%s361 + $0x50] sm:$0xff]
    %v373 = vld [vmem:[%s361 + $0x58] sm:$0xff]
    %v374 = vld [vmem:[%s361 + $0x60] sm:$0xff]
    %v375 = vld [vmem:[%s361 + $0x68] sm:$0xff]
    %v376 = vld [vmem:[%s361 + $0x70] sm:$0xff]
    %v377 = vld [vmem:[%s361 + $0x78] sm:$0xff]
    %v378 = vld [vmem:[%s361 + $0x80] sm:$0xff]
    %v379 = vld [vmem:[%s361 + $0x88] sm:$0xff]
    %v380 = vld [vmem:[%s361 + $0x90] sm:$0xff]
    %v381 = vld [vmem:[%s361 + $0x98] sm:$0xff]
    %v382 = vld [vmem:[%s361 + $0xa0] sm:$0xff]
    %v383 = vld [vmem:[%s361 + $0xa8] sm:$0xff]
    %v384 = vld [vmem:[%s361 + $0xb0] sm:$0xff]
    %v385 = vld [vmem:[%s361 + $0xb8] sm:$0xff]
    %v386 = vld [vmem:[%s361 + $0xc0] sm:$0xff]
    %v387 = vld [vmem:[%s361 + $0xc8] sm:$0xff]
    %v388 = vld [vmem:[%s361 + $0xd0] sm:$0xff]
    %v389 = vld [vmem:[%s361 + $0xd8] sm:$0xff]
    %v390 = vld [vmem:[%s361 + $0xe0] sm:$0xff]
    %v391 = vld [vmem:[%s361 + $0xe8] sm:$0xff]
    %v392 = vld [vmem:[%s361 + $0xf0] sm:$0xff]
    %v393 = vld [vmem:[%s361 + $0xf8] sm:$0xff]
    %v394 = vld [vmem:[%s361 + $0x100] sm:$0xff]
    %v395 = vld [vmem:[%s361 + $0x108] sm:$0xff]
    %v396 = vld [vmem:[%s361 + $0x110] sm:$0xff]
    %v397 = vld [vmem:[%s361 + $0x118] sm:$0xff]
    %v398 = vld [vmem:[%s361 + $0x120] sm:$0xff]
    %v399 = vld [vmem:[%s361 + $0x128] sm:$0xff]
    %v400 = vld [vmem:[%s361 + $0x130] sm:$0xff]
    %v401 = vld [vmem:[%s361 + $0x138] sm:$0xff]
    %v402 = vld [vmem:[%s361 + $0x140] sm:$0xff]
    %v403 = vld [vmem:[%s361 + $0x148] sm:$0xff]
    %v404 = vld [vmem:[%s361 + $0x150] sm:$0xff]
    %v405 = vld [vmem:[%s361 + $0x158] sm:$0xff]
    %v406 = vld [vmem:[%s361 + $0x160] sm:$0xff]
    %v407 = vld [vmem:[%s361 + $0x168] sm:$0xff]
    %v408 = vld [vmem:[%s361 + $0x170] sm:$0xff]
    %v409 = vld [vmem:[%s361 + $0x178] sm:$0xff]
    %v410 = vld [vmem:[%s361 + $0x180] sm:$0xff]
    %v411 = vld [vmem:[%s361 + $0x188] sm:$0xff]
    %v412 = vld [vmem:[%s361 + $0x190] sm:$0xff]
    %v413 = vld [vmem:[%s361 + $0x198] sm:$0xff]
    %v414 = vld [vmem:[%s361 + $0x1a0] sm:$0xff]
    %v415 = vld [vmem:[%s361 + $0x1a8] sm:$0xff]
    %v416 = vld [vmem:[%s361 + $0x1b0] sm:$0xff]
    %v417 = vld [vmem:[%s361 + $0x1b8] sm:$0xff]
    %v418 = vld [vmem:[%s361 + $0x1c0] sm:$0xff]
    %v419 = vld [vmem:[%s361 + $0x1c8] sm:$0xff]
    %v420 = vld [vmem:[%s361 + $0x1d0] sm:$0xff]
    %v421 = vld [vmem:[%s361 + $0x1d8] sm:$0xff]
    %v422 = vld [vmem:[%s361 + $0x1e0] sm:$0xff]
    %v423 = vld [vmem:[%s361 + $0x1e8] sm:$0xff]
    %v424 = vld [vmem:[%s361 + $0x1f0] sm:$0xff]
    %v425 = vld [vmem:[%s361 + $0x1f8] sm:$0xff]
    %s426 = scalar_lea.vmem [#allocation7], 4
    %v427 = vld [vmem:[%s426] sm:$0x3]
    %v429 = vlaneseq
    %v430 = vshrl.u32 %v429, 7
    %v431 = vsub.s32 0, %v430
    %v432 = vrot.slane %v427, %v431
    %v433 = vlaneseq
    %v434 = vshrl.u32 %v433, 7
    %v435 = vsub.s32 1, %v434
    %v436 = vrot.slane %v427, %v435
    %439 = vmatprep.subr.mxu0 %v393
    %440 = vmatpush1.msra.mxu0 %v392
    %441 = vmatprep.subr.mxu0 %v391
    %442 = vmatpush1.msra.mxu0 %v390
    %443 = vmatprep.subr.mxu0 %v389
    %444 = vmatpush1.msra.mxu0 %v388
    %445 = vmatprep.subr.mxu0 %v387
    %446 = vmatpush1.msra.mxu0 %v386
    %447 = vmatprep.subr.mxu0 %v385
    %448 = vmatpush1.msra.mxu0 %v384
    %449 = vmatprep.subr.mxu0 %v383
    %450 = vmatpush1.msra.mxu0 %v382
    %451 = vmatprep.subr.mxu0 %v381
    %452 = vmatpush1.msra.mxu0 %v380
    %453 = vmatprep.subr.mxu0 %v379
    %454 = vmatpush1.msra.mxu0 %v378
    %455 = vmatprep.subr.mxu0 %v377
    %456 = vmatpush1.msra.mxu0 %v376
    %457 = vmatprep.subr.mxu0 %v375
    %458 = vmatpush1.msra.mxu0 %v374
    %459 = vmatprep.subr.mxu0 %v373
    %460 = vmatpush1.msra.mxu0 %v372
    %461 = vmatprep.subr.mxu0 %v371
    %462 = vmatpush1.msra.mxu0 %v370
    %463 = vmatprep.subr.mxu0 %v369
    %464 = vmatpush1.msra.mxu0 %v368
    %465 = vmatprep.subr.mxu0 %v367
    %466 = vmatpush1.msra.mxu0 %v366
    %467 = vmatprep.subr.mxu0 %v365
    %468 = vmatpush1.msra.mxu0 %v364
    %469 = vmatprep.subr.mxu0 %v363
    %470 = vmatpush1.msra.mxu0 %v362
    %471 = vmatprep.subr.mxu0 %v425
    %472 = vmatpush2.msra.mxu0 %v424
    %473 = vmatprep.subr.mxu0 %v423
    %474 = vmatpush2.msra.mxu0 %v422
    %475 = vmatprep.subr.mxu0 %v421
    %476 = vmatpush2.msra.mxu0 %v420
    %477 = vmatprep.subr.mxu0 %v419
    %478 = vmatpush2.msra.mxu0 %v418
    %479 = vmatprep.subr.mxu0 %v417
    %480 = vmatpush2.msra.mxu0 %v416
    %481 = vmatprep.subr.mxu0 %v415
    %482 = vmatpush2.msra.mxu0 %v414
    %483 = vmatprep.subr.mxu0 %v413
    %484 = vmatpush2.msra.mxu0 %v412
    %485 = vmatprep.subr.mxu0 %v411
    %486 = vmatpush2.msra.mxu0 %v410
    %487 = vmatprep.subr.mxu0 %v409
    %488 = vmatpush2.msra.mxu0 %v408
    %489 = vmatprep.subr.mxu0 %v407
    %490 = vmatpush2.msra.mxu0 %v406
    %491 = vmatprep.subr.mxu0 %v405
    %492 = vmatpush2.msra.mxu0 %v404
    %493 = vmatprep.subr.mxu0 %v403
    %494 = vmatpush2.msra.mxu0 %v402
    %495 = vmatprep.subr.mxu0 %v401
    %496 = vmatpush2.msra.mxu0 %v400
    %497 = vmatprep.subr.mxu0 %v399
    %498 = vmatpush2.msra.mxu0 %v398
    %499 = vmatprep.subr.mxu0 %v397
    %500 = vmatpush2.msra.mxu0 %v396
    %501 = vmatprep.subr.mxu0 %v395
    %502 = vmatpush2.msra.mxu0 %v394
    %503 = vmatprep.mubr.f32.mxu0 %v357
    %504 = vmatmul.mubr.f32.gmra.mxu0 %v356
    %v505 = vpop.f32.mrf.mxu0
    %v506 = vadd.f32 %v432, %v505
    %v507 = vpop.f32.mrf.mxu0
    %v508 = vadd.f32 %v436, %v507
    %509 = vdwg.mxu0
    %v510 = vmax.f32 %v506, 0.0
    %v511 = vmax.f32 %v508, 0.0
    %s512 = scalar_lea.vmem [#allocation8], 32
    %513 = vst [vmem:[%s512] sm:$0xff] %v510
    %514 = vst [vmem:[%s512 + $0x8] sm:$0xff] %v511
    %s515 = scalar_lea.vmem [#allocation5], 1536
    %v516 = vld [vmem:[%s515] sm:$0xff]
    %v517 = vld [vmem:[%s515 + $0x8] sm:$0xff]
    %v518 = vld [vmem:[%s515 + $0x10] sm:$0xff]
    %v519 = vld [vmem:[%s515 + $0x18] sm:$0xff]
    %v520 = vld [vmem:[%s515 + $0x20] sm:$0xff]
    %v521 = vld [vmem:[%s515 + $0x28] sm:$0xff]
    %v522 = vld [vmem:[%s515 + $0x30] sm:$0xff]
    %v523 = vld [vmem:[%s515 + $0x38] sm:$0xff]
    %v524 = vld [vmem:[%s515 + $0x40] sm:$0xff]
    %v525 = vld [vmem:[%s515 + $0x48] sm:$0xff]
    %v526 = vld [vmem:[%s515 + $0x50] sm:$0xff]
    %v527 = vld [vmem:[%s515 + $0x58] sm:$0xff]
    %v528 = vld [vmem:[%s515 + $0x60] sm:$0xff]
    %v529 = vld [vmem:[%s515 + $0x68] sm:$0xff]
    %v530 = vld [vmem:[%s515 + $0x70] sm:$0xff]
    %v531 = vld [vmem:[%s515 + $0x78] sm:$0xff]
    %v532 = vld [vmem:[%s515 + $0x80] sm:$0xff]
    %v533 = vld [vmem:[%s515 + $0x88] sm:$0xff]
    %v534 = vld [vmem:[%s515 + $0x90] sm:$0xff]
    %v535 = vld [vmem:[%s515 + $0x98] sm:$0xff]
    %v536 = vld [vmem:[%s515 + $0xa0] sm:$0xff]
    %v537 = vld [vmem:[%s515 + $0xa8] sm:$0xff]
    %v538 = vld [vmem:[%s515 + $0xb0] sm:$0xff]
    %v539 = vld [vmem:[%s515 + $0xb8] sm:$0xff]
    %v540 = vld [vmem:[%s515 + $0xc0] sm:$0xff]
    %v541 = vld [vmem:[%s515 + $0xc8] sm:$0xff]
    %v542 = vld [vmem:[%s515 + $0xd0] sm:$0xff]
    %v543 = vld [vmem:[%s515 + $0xd8] sm:$0xff]
    %v544 = vld [vmem:[%s515 + $0xe0] sm:$0xff]
    %v545 = vld [vmem:[%s515 + $0xe8] sm:$0xff]
    %v546 = vld [vmem:[%s515 + $0xf0] sm:$0xff]
    %v547 = vld [vmem:[%s515 + $0xf8] sm:$0xff]
    %v548 = vld [vmem:[%s515 + $0x100] sm:$0xff]
    %v549 = vld [vmem:[%s515 + $0x108] sm:$0xff]
    %v550 = vld [vmem:[%s515 + $0x110] sm:$0xff]
    %v551 = vld [vmem:[%s515 + $0x118] sm:$0xff]
    %v552 = vld [vmem:[%s515 + $0x120] sm:$0xff]
    %v553 = vld [vmem:[%s515 + $0x128] sm:$0xff]
    %v554 = vld [vmem:[%s515 + $0x130] sm:$0xff]
    %v555 = vld [vmem:[%s515 + $0x138] sm:$0xff]
    %v556 = vld [vmem:[%s515 + $0x140] sm:$0xff]
    %v557 = vld [vmem:[%s515 + $0x148] sm:$0xff]
    %v558 = vld [vmem:[%s515 + $0x150] sm:$0xff]
    %v559 = vld [vmem:[%s515 + $0x158] sm:$0xff]
    %v560 = vld [vmem:[%s515 + $0x160] sm:$0xff]
    %v561 = vld [vmem:[%s515 + $0x168] sm:$0xff]
    %v562 = vld [vmem:[%s515 + $0x170] sm:$0xff]
    %v563 = vld [vmem:[%s515 + $0x178] sm:$0xff]
    %v564 = vld [vmem:[%s515 + $0x180] sm:$0xff]
    %v565 = vld [vmem:[%s515 + $0x188] sm:$0xff]
    %v566 = vld [vmem:[%s515 + $0x190] sm:$0xff]
    %v567 = vld [vmem:[%s515 + $0x198] sm:$0xff]
    %v568 = vld [vmem:[%s515 + $0x1a0] sm:$0xff]
    %v569 = vld [vmem:[%s515 + $0x1a8] sm:$0xff]
    %v570 = vld [vmem:[%s515 + $0x1b0] sm:$0xff]
    %v571 = vld [vmem:[%s515 + $0x1b8] sm:$0xff]
    %v572 = vld [vmem:[%s515 + $0x1c0] sm:$0xff]
    %v573 = vld [vmem:[%s515 + $0x1c8] sm:$0xff]
    %v574 = vld [vmem:[%s515 + $0x1d0] sm:$0xff]
    %v575 = vld [vmem:[%s515 + $0x1d8] sm:$0xff]
    %v576 = vld [vmem:[%s515 + $0x1e0] sm:$0xff]
    %v577 = vld [vmem:[%s515 + $0x1e8] sm:$0xff]
    %v578 = vld [vmem:[%s515 + $0x1f0] sm:$0xff]
    %v579 = vld [vmem:[%s515 + $0x1f8] sm:$0xff]
    %s580 = scalar_lea.vmem [#allocation7], 6
    %v581 = vld [vmem:[%s580] sm:$0x3]
    %v583 = vlaneseq
    %v584 = vshrl.u32 %v583, 7
    %v585 = vsub.s32 0, %v584
    %v586 = vrot.slane %v581, %v585
    %v587 = vlaneseq
    %v588 = vshrl.u32 %v587, 7
    %v589 = vsub.s32 1, %v588
    %v590 = vrot.slane %v581, %v589
    %593 = vmatprep.subr.mxu0 %v547
    %594 = vmatpush1.msra.mxu0 %v546
    %595 = vmatprep.subr.mxu0 %v545
    %596 = vmatpush1.msra.mxu0 %v544
    %597 = vmatprep.subr.mxu0 %v543
    %598 = vmatpush1.msra.mxu0 %v542
    %599 = vmatprep.subr.mxu0 %v541
    %600 = vmatpush1.msra.mxu0 %v540
    %601 = vmatprep.subr.mxu0 %v539
    %602 = vmatpush1.msra.mxu0 %v538
    %603 = vmatprep.subr.mxu0 %v537
    %604 = vmatpush1.msra.mxu0 %v536
    %605 = vmatprep.subr.mxu0 %v535
    %606 = vmatpush1.msra.mxu0 %v534
    %607 = vmatprep.subr.mxu0 %v533
    %608 = vmatpush1.msra.mxu0 %v532
    %609 = vmatprep.subr.mxu0 %v531
    %610 = vmatpush1.msra.mxu0 %v530
    %611 = vmatprep.subr.mxu0 %v529
    %612 = vmatpush1.msra.mxu0 %v528
    %613 = vmatprep.subr.mxu0 %v527
    %614 = vmatpush1.msra.mxu0 %v526
    %615 = vmatprep.subr.mxu0 %v525
    %616 = vmatpush1.msra.mxu0 %v524
    %617 = vmatprep.subr.mxu0 %v523
    %618 = vmatpush1.msra.mxu0 %v522
    %619 = vmatprep.subr.mxu0 %v521
    %620 = vmatpush1.msra.mxu0 %v520
    %621 = vmatprep.subr.mxu0 %v519
    %622 = vmatpush1.msra.mxu0 %v518
    %623 = vmatprep.subr.mxu0 %v517
    %624 = vmatpush1.msra.mxu0 %v516
    %625 = vmatprep.subr.mxu0 %v579
    %626 = vmatpush2.msra.mxu0 %v578
    %627 = vmatprep.subr.mxu0 %v577
    %628 = vmatpush2.msra.mxu0 %v576
    %629 = vmatprep.subr.mxu0 %v575
    %630 = vmatpush2.msra.mxu0 %v574
    %631 = vmatprep.subr.mxu0 %v573
    %632 = vmatpush2.msra.mxu0 %v572
    %633 = vmatprep.subr.mxu0 %v571
    %634 = vmatpush2.msra.mxu0 %v570
    %635 = vmatprep.subr.mxu0 %v569
    %636 = vmatpush2.msra.mxu0 %v568
    %637 = vmatprep.subr.mxu0 %v567
    %638 = vmatpush2.msra.mxu0 %v566
    %639 = vmatprep.subr.mxu0 %v565
    %640 = vmatpush2.msra.mxu0 %v564
    %641 = vmatprep.subr.mxu0 %v563
    %642 = vmatpush2.msra.mxu0 %v562
    %643 = vmatprep.subr.mxu0 %v561
    %644 = vmatpush2.msra.mxu0 %v560
    %645 = vmatprep.subr.mxu0 %v559
    %646 = vmatpush2.msra.mxu0 %v558
    %647 = vmatprep.subr.mxu0 %v557
    %648 = vmatpush2.msra.mxu0 %v556
    %649 = vmatprep.subr.mxu0 %v555
    %650 = vmatpush2.msra.mxu0 %v554
    %651 = vmatprep.subr.mxu0 %v553
    %652 = vmatpush2.msra.mxu0 %v552
    %653 = vmatprep.subr.mxu0 %v551
    %654 = vmatpush2.msra.mxu0 %v550
    %655 = vmatprep.subr.mxu0 %v549
    %656 = vmatpush2.msra.mxu0 %v548
    %657 = vmatprep.mubr.f32.mxu0 %v511
    %658 = vmatmul.mubr.f32.gmra.mxu0 %v510
    %v659 = vpop.f32.mrf.mxu0
    %v660 = vadd.f32 %v586, %v659
    %v661 = vpop.f32.mrf.mxu0
    %v662 = vadd.f32 %v590, %v661
    %663 = vdwg.mxu0
    %v664 = vmax.f32 %v660, 0.0
    %v665 = vmax.f32 %v662, 0.0
    %s666 = scalar_lea.vmem [#allocation8], 48
    %667 = vst [vmem:[%s666] sm:$0xff] %v664
    %668 = vst [vmem:[%s666 + $0x8] sm:$0xff] %v665
    %s669 = scalar_lea.vmem [#allocation5], 2048
    %v670 = vld [vmem:[%s669] sm:$0xff]
    %v671 = vld [vmem:[%s669 + $0x8] sm:$0xff]
    %v672 = vld [vmem:[%s669 + $0x10] sm:$0xff]
    %v673 = vld [vmem:[%s669 + $0x18] sm:$0xff]
    %v674 = vld [vmem:[%s669 + $0x20] sm:$0xff]
    %v675 = vld [vmem:[%s669 + $0x28] sm:$0xff]
    %v676 = vld [vmem:[%s669 + $0x30] sm:$0xff]
    %v677 = vld [vmem:[%s669 + $0x38] sm:$0xff]
    %v678 = vld [vmem:[%s669 + $0x40] sm:$0xff]
    %v679 = vld [vmem:[%s669 + $0x48] sm:$0xff]
    %v680 = vld [vmem:[%s669 + $0x50] sm:$0xff]
    %v681 = vld [vmem:[%s669 + $0x58] sm:$0xff]
    %v682 = vld [vmem:[%s669 + $0x60] sm:$0xff]
    %v683 = vld [vmem:[%s669 + $0x68] sm:$0xff]
    %v684 = vld [vmem:[%s669 + $0x70] sm:$0xff]
    %v685 = vld [vmem:[%s669 + $0x78] sm:$0xff]
    %v686 = vld [vmem:[%s669 + $0x80] sm:$0xff]
    %v687 = vld [vmem:[%s669 + $0x88] sm:$0xff]
    %v688 = vld [vmem:[%s669 + $0x90] sm:$0xff]
    %v689 = vld [vmem:[%s669 + $0x98] sm:$0xff]
    %v690 = vld [vmem:[%s669 + $0xa0] sm:$0xff]
    %v691 = vld [vmem:[%s669 + $0xa8] sm:$0xff]
    %v692 = vld [vmem:[%s669 + $0xb0] sm:$0xff]
    %v693 = vld [vmem:[%s669 + $0xb8] sm:$0xff]
    %v694 = vld [vmem:[%s669 + $0xc0] sm:$0xff]
    %v695 = vld [vmem:[%s669 + $0xc8] sm:$0xff]
    %v696 = vld [vmem:[%s669 + $0xd0] sm:$0xff]
    %v697 = vld [vmem:[%s669 + $0xd8] sm:$0xff]
    %v698 = vld [vmem:[%s669 + $0xe0] sm:$0xff]
    %v699 = vld [vmem:[%s669 + $0xe8] sm:$0xff]
    %v700 = vld [vmem:[%s669 + $0xf0] sm:$0xff]
    %v701 = vld [vmem:[%s669 + $0xf8] sm:$0xff]
    %v702 = vld [vmem:[%s669 + $0x100] sm:$0xff]
    %v703 = vld [vmem:[%s669 + $0x108] sm:$0xff]
    %v704 = vld [vmem:[%s669 + $0x110] sm:$0xff]
    %v705 = vld [vmem:[%s669 + $0x118] sm:$0xff]
    %v706 = vld [vmem:[%s669 + $0x120] sm:$0xff]
    %v707 = vld [vmem:[%s669 + $0x128] sm:$0xff]
    %v708 = vld [vmem:[%s669 + $0x130] sm:$0xff]
    %v709 = vld [vmem:[%s669 + $0x138] sm:$0xff]
    %v710 = vld [vmem:[%s669 + $0x140] sm:$0xff]
    %v711 = vld [vmem:[%s669 + $0x148] sm:$0xff]
    %v712 = vld [vmem:[%s669 + $0x150] sm:$0xff]
    %v713 = vld [vmem:[%s669 + $0x158] sm:$0xff]
    %v714 = vld [vmem:[%s669 + $0x160] sm:$0xff]
    %v715 = vld [vmem:[%s669 + $0x168] sm:$0xff]
    %v716 = vld [vmem:[%s669 + $0x170] sm:$0xff]
    %v717 = vld [vmem:[%s669 + $0x178] sm:$0xff]
    %v718 = vld [vmem:[%s669 + $0x180] sm:$0xff]
    %v719 = vld [vmem:[%s669 + $0x188] sm:$0xff]
    %v720 = vld [vmem:[%s669 + $0x190] sm:$0xff]
    %v721 = vld [vmem:[%s669 + $0x198] sm:$0xff]
    %v722 = vld [vmem:[%s669 + $0x1a0] sm:$0xff]
    %v723 = vld [vmem:[%s669 + $0x1a8] sm:$0xff]
    %v724 = vld [vmem:[%s669 + $0x1b0] sm:$0xff]
    %v725 = vld [vmem:[%s669 + $0x1b8] sm:$0xff]
    %v726 = vld [vmem:[%s669 + $0x1c0] sm:$0xff]
    %v727 = vld [vmem:[%s669 + $0x1c8] sm:$0xff]
    %v728 = vld [vmem:[%s669 + $0x1d0] sm:$0xff]
    %v729 = vld [vmem:[%s669 + $0x1d8] sm:$0xff]
    %v730 = vld [vmem:[%s669 + $0x1e0] sm:$0xff]
    %v731 = vld [vmem:[%s669 + $0x1e8] sm:$0xff]
    %v732 = vld [vmem:[%s669 + $0x1f0] sm:$0xff]
    %v733 = vld [vmem:[%s669 + $0x1f8] sm:$0xff]
    %s734 = scalar_lea.vmem [#allocation7], 8
    %v735 = vld [vmem:[%s734] sm:$0x3]
    %v737 = vlaneseq
    %v738 = vshrl.u32 %v737, 7
    %v739 = vsub.s32 0, %v738
    %v740 = vrot.slane %v735, %v739
    %v741 = vlaneseq
    %v742 = vshrl.u32 %v741, 7
    %v743 = vsub.s32 1, %v742
    %v744 = vrot.slane %v735, %v743
    %747 = vmatprep.subr.mxu0 %v701
    %748 = vmatpush1.msra.mxu0 %v700
    %749 = vmatprep.subr.mxu0 %v699
    %750 = vmatpush1.msra.mxu0 %v698
    %751 = vmatprep.subr.mxu0 %v697
    %752 = vmatpush1.msra.mxu0 %v696
    %753 = vmatprep.subr.mxu0 %v695
    %754 = vmatpush1.msra.mxu0 %v694
    %755 = vmatprep.subr.mxu0 %v693
    %756 = vmatpush1.msra.mxu0 %v692
    %757 = vmatprep.subr.mxu0 %v691
    %758 = vmatpush1.msra.mxu0 %v690
    %759 = vmatprep.subr.mxu0 %v689
    %760 = vmatpush1.msra.mxu0 %v688
    %761 = vmatprep.subr.mxu0 %v687
    %762 = vmatpush1.msra.mxu0 %v686
    %763 = vmatprep.subr.mxu0 %v685
    %764 = vmatpush1.msra.mxu0 %v684
    %765 = vmatprep.subr.mxu0 %v683
    %766 = vmatpush1.msra.mxu0 %v682
    %767 = vmatprep.subr.mxu0 %v681
    %768 = vmatpush1.msra.mxu0 %v680
    %769 = vmatprep.subr.mxu0 %v679
    %770 = vmatpush1.msra.mxu0 %v678
    %771 = vmatprep.subr.mxu0 %v677
    %772 = vmatpush1.msra.mxu0 %v676
    %773 = vmatprep.subr.mxu0 %v675
    %774 = vmatpush1.msra.mxu0 %v674
    %775 = vmatprep.subr.mxu0 %v673
    %776 = vmatpush1.msra.mxu0 %v672
    %777 = vmatprep.subr.mxu0 %v671
    %778 = vmatpush1.msra.mxu0 %v670
    %779 = vmatprep.subr.mxu0 %v733
    %780 = vmatpush2.msra.mxu0 %v732
    %781 = vmatprep.subr.mxu0 %v731
    %782 = vmatpush2.msra.mxu0 %v730
    %783 = vmatprep.subr.mxu0 %v729
    %784 = vmatpush2.msra.mxu0 %v728
    %785 = vmatprep.subr.mxu0 %v727
    %786 = vmatpush2.msra.mxu0 %v726
    %787 = vmatprep.subr.mxu0 %v725
    %788 = vmatpush2.msra.mxu0 %v724
    %789 = vmatprep.subr.mxu0 %v723
    %790 = vmatpush2.msra.mxu0 %v722
    %791 = vmatprep.subr.mxu0 %v721
    %792 = vmatpush2.msra.mxu0 %v720
    %793 = vmatprep.subr.mxu0 %v719
    %794 = vmatpush2.msra.mxu0 %v718
    %795 = vmatprep.subr.mxu0 %v717
    %796 = vmatpush2.msra.mxu0 %v716
    %797 = vmatprep.subr.mxu0 %v715
    %798 = vmatpush2.msra.mxu0 %v714
    %799 = vmatprep.subr.mxu0 %v713
    %800 = vmatpush2.msra.mxu0 %v712
    %801 = vmatprep.subr.mxu0 %v711
    %802 = vmatpush2.msra.mxu0 %v710
    %803 = vmatprep.subr.mxu0 %v709
    %804 = vmatpush2.msra.mxu0 %v708
    %805 = vmatprep.subr.mxu0 %v707
    %806 = vmatpush2.msra.mxu0 %v706
    %807 = vmatprep.subr.mxu0 %v705
    %808 = vmatpush2.msra.mxu0 %v704
    %809 = vmatprep.subr.mxu0 %v703
    %810 = vmatpush2.msra.mxu0 %v702
    %811 = vmatprep.mubr.f32.mxu0 %v665
    %812 = vmatmul.mubr.f32.gmra.mxu0 %v664
    %v813 = vpop.f32.mrf.mxu0
    %v814 = vadd.f32 %v740, %v813
    %v815 = vpop.f32.mrf.mxu0
    %v816 = vadd.f32 %v744, %v815
    %817 = vdwg.mxu0
    %s818 = scalar_lea.vmem [#allocation8], 64
    %819 = vst [vmem:[%s818] sm:$0xff] %v814
    %820 = vst [vmem:[%s818 + $0x8] sm:$0xff] %v816
    // Predicated region
    $region26: #{tpu_custom_call.1} parent=1 // pred_check
      _
    $region27: #{tpu_custom_call.1} parent=1 // pred_check_branch
      %822 = sbr.rel (0) target = $region29
    $region28: #{tpu_custom_call.1} parent=1 // pred_region
      %s824 = ssub.s32 1280, 1280
      %825 = vsyncadd [#allocation4], %s824
      %s826 = sshll.u32 [#allocation8], 4
      %s827 = int_to_ptr.vmem [resolvable:$true] %s826
      %832 = dma.vmem_to_hbm [thread:$0]  %s827, 1280, %s3, [#allocation4], 256, 256, 16
    $region29: #{tpu_custom_call.1} parent=1 // pred_fallthru
      _
    // Predicated region
    $region30: #{tpu_custom_call.1} parent=1 // pred_check
      _
    $region31: #{tpu_custom_call.1} parent=1 // pred_check_branch
      %834 = sbr.rel (0) target = $region33
    $region32: #{tpu_custom_call.1} parent=1 // pred_region
      %835 = dma.done [#allocation4], 1280
    $region33: #{tpu_custom_call.1} parent=1 // pred_fallthru
      _
    %836 = vsyncpa [#allocation3], 1
    %837 = vsyncpa [#allocation6], 1
    %838 = vsyncpa [#allocation4], 1

</llo_original>
